<compile_context>
chip_gen: v5e
topology: v5e:2x2
jax: 0.10.0
libtpu: 0.0.40
codegen_flags: <defaults>
</compile_context>

<pallas_src>
import math

import jax
import jax.numpy as jnp
from jax.experimental import pallas as pl
from jax.experimental.pallas import tpu as pltpu


def _vmem_limit_bytes():
    """Generation-aware scoped-VMEM budget (v5e/v6e: 128 MiB, v7x: 64 MiB)."""
    phys = 64 * 1024 * 1024                      # conservative fallback (v7x)
    try:
        phys = int(getattr(pltpu.get_tpu_info(), "vmem_capacity_bytes", phys))
    except Exception:
        pass
    return min(phys * 3 // 4, 96 * 1024 * 1024)


# ----------------------------------------------------------------------------
# Kernels
# ----------------------------------------------------------------------------
def _vit_project_kernel(x_ref, w_ref, b_ref, o_ref):
    """Tiled (B, F) @ (F, D) + b; bf16 operands, f32 in-place accumulation.

    grid = (D // tn, F // tk).  The output block index (0, j) is constant
    across the reduction axis k, so o_ref stays resident and accumulates
    directly (no extra VMEM scratch, no final copy).
    """
    k = pl.program_id(1)

    @pl.when(k == 0)
    def _():
        o_ref[...] = jnp.zeros_like(o_ref)

    o_ref[...] += jnp.dot(x_ref[...], w_ref[...],
                          preferred_element_type=jnp.float32)

    @pl.when(k == pl.num_programs(1) - 1)
    def _():
        o_ref[...] += b_ref[...]


def _clip_tail_kernel(v_ref, st_ref, wt_ref, bt_ref, ls_ref,
                      vout_ref, tout_ref, logits_ref):
    """Fused CLIP tail, batch-tiled on an (i, j) grid.

      video rows (i): L2-normalize the (fully folded) video embedding
      text  rows (j): one bf16 GEMM (folded gpt ∘ text_adapter) + L2 norm
      logits (i, j):  exp(logit_scale) * v_norm @ t_norm.T (bf16 MXU operands)
    """
    eps = 1e-12

    # --- video branch (projection chain fully folded into the ViT GEMM) ---
    v = v_ref[...]
    v = v * jax.lax.rsqrt(jnp.sum(v * v, axis=-1, keepdims=True) + eps)

    # --- text branch: single folded (D, D) matmul, bf16 x bf16 -> f32 ---
    t = jnp.dot(st_ref[...], wt_ref[...],
                preferred_element_type=jnp.float32) + bt_ref[...]
    t = t * jax.lax.rsqrt(jnp.sum(t * t, axis=-1, keepdims=True) + eps)

    scale = jnp.exp(ls_ref[...])                  # (1, 1) -> broadcasts
    vout_ref[...] = scale * v
    tout_ref[...] = t
    # Contract last dims of both operands (no XLU transpose before the MXU).
    logits_ref[...] = scale * jax.lax.dot_general(
        v.astype(jnp.bfloat16), t.astype(jnp.bfloat16),
        (((1,), (1,)), ((), ())),
        preferred_element_type=jnp.float32)


# ----------------------------------------------------------------------------
# Wrapper
# ----------------------------------------------------------------------------
class NaiveCLIPPallas:
    def __init__(self, frame_num, channels, height, width, embed_dim, seq_len,
                 vocab_size, seed=42):
        self.frame_num = int(frame_num)
        self.seq_len = int(seq_len)
        self.D = int(embed_dim)
        self.F = int(channels * height * width)
        D = self.D

        # ---- ViT-projection tiling (weight-streaming GEMM) -----------------
        F_pad = ((self.F + 127) // 128) * 128
        if F_pad <= 2048:
            tk = F_pad                            # single reduction step
        else:
            tk = 128
            for cand in (2048, 1024, 512, 384, 256, 128):
                if F_pad % cand == 0:
                    tk = cand
                    break
        self.F_pad, self.tk = F_pad, tk

        if D % 128 != 0 or D <= 256:
            tn = D                                # full-D lane block
        else:
            tn = D
            for cand in (512, 384, 256, 128):
                # keep >= 2 lane blocks so v7x megacore can split axis 0
                if D % cand == 0 and D // cand >= 2:
                    tn = cand
                    break
        self.tn = tn

        self._vmem_limit = _vmem_limit_bytes()

        # ---- deterministic synthetic parameters ----------------------------
        # TODO(synk): build_ViT/build_GPT/temporal_encoder/adapter configs are
        # not provided; each is modeled as a linear layer of matching role.
        keys = jax.random.split(jax.random.PRNGKey(seed), 6)
        s = 0.02
        w_vit = s * jax.random.normal(keys[0], (self.F, D), jnp.float32)
        w_temp = s * jax.random.normal(keys[1], (D, D), jnp.float32)
        w_vad = s * jax.random.normal(keys[2], (D, D), jnp.float32)
        tok_table = s * jax.random.normal(keys[3], (vocab_size, D), jnp.float32)
        w_gpt = s * jax.random.normal(keys[4], (D, D), jnp.float32)
        w_tad = s * jax.random.normal(keys[5], (D, D), jnp.float32)
        b_vit = jnp.zeros((1, D), jnp.float32)
        b_temp = jnp.zeros((1, D), jnp.float32)
        b_vad = jnp.zeros((1, D), jnp.float32)
        b_gpt = jnp.zeros((1, D), jnp.float32)
        b_tad = jnp.zeros((1, D), jnp.float32)
        logit_scale = jnp.full((1, 1), math.log(1.0 / 0.07), jnp.float32)

        # ---- offline folds (exact: linear ∘ linear is linear) ---------------
        w_video = w_vit @ w_temp @ w_vad                            # (F, D)
        b_video = (b_vit @ w_temp + b_temp) @ w_vad + b_vad         # (1, D)
        w_text = w_gpt @ w_tad                                      # (D, D)
        b_text = b_gpt @ w_tad + b_tad                              # (1, D)
        if F_pad > self.F:                    # zero rows for padded K slice
            w_video = jnp.pad(w_video, ((0, F_pad - self.F), (0, 0)))

        self.params = dict(
            w_video=w_video.astype(jnp.bfloat16),    # bf16 MXU operand
            b_video=b_video,
            tok_table=tok_table,
            w_text=w_text.astype(jnp.bfloat16),
            b_text=b_text,
            logit_scale=logit_scale,
        )
        # un-folded f32 copies for the pure-JAX reference check
        self.ref_params = dict(
            w_vit=w_vit, b_vit=b_vit, w_temp=w_temp, b_temp=b_temp,
            w_vad=w_vad, b_vad=b_vad, tok_table=tok_table,
            w_gpt=w_gpt, b_gpt=b_gpt, w_tad=w_tad, b_tad=b_tad,
            logit_scale=logit_scale,
        )

        self._core = jax.jit(self._forward_core)

    # --- pallas_call wrappers -------------------------------------------------
    def _vit_project(self, x_bf16):
        B = x_bf16.shape[0]
        D, tn, tk, F_pad = self.D, self.tn, self.tk, self.F_pad
        p = self.params
        flops = 2 * B * F_pad * D
        bytes_accessed = (B * F_pad + F_pad * D) * 2 + (B * D + D) * 4
        return pl.pallas_call(
            _vit_project_kernel,
            out_shape=jax.ShapeDtypeStruct((B, D), jnp.float32),
            grid=(D // tn, F_pad // tk),
            in_specs=[
                pl.BlockSpec((B, tk), lambda j, k: (0, k)),
                pl.BlockSpec((tk, tn), lambda j, k: (k, j)),
                pl.BlockSpec((1, tn), lambda j, k: (0, j)),
            ],
            out_specs=pl.BlockSpec((B, tn), lambda j, k: (0, j)),
            compiler_params=pltpu.CompilerParams(
                dimension_semantics=("parallel", "arbitrary"),
                vmem_limit_bytes=self._vmem_limit),
            cost_estimate=pl.CostEstimate(
                flops=flops, transcendentals=0,
                bytes_accessed=bytes_accessed),
        )(x_bf16, p["w_video"], p["b_video"])

    @staticmethod
    def _tail_tiles(B):
        if B <= 512:
            return B, B                       # single full-array block
        tb = 256                              # lane-dense logits tiles
        return tb, ((B + tb - 1) // tb) * tb

    def _fused_tail(self, v_pre, sel_tok_bf16):
        B, D = v_pre.shape
        tb, B_pad = self._tail_tiles(B)
        if B_pad > B:
            pad = B_pad - B
            v_pre = jnp.pad(v_pre, ((0, pad), (0, 0)))
            sel_tok_bf16 = jnp.pad(sel_tok_bf16, ((0, pad), (0, 0)))
        nb = B_pad // tb
        p = self.params
        vout, tout, logits = pl.pallas_call(
            _clip_tail_kernel,
            out_shape=(
                jax.ShapeDtypeStruct((B_pad, D), jnp.float32),
                jax.ShapeDtypeStruct((B_pad, D), jnp.float32),
                jax.ShapeDtypeStruct((B_pad, B_pad), jnp.float32),
            ),
            grid=(nb, nb),
            in_specs=[
                pl.BlockSpec((tb, D), lambda i, j: (i, 0)),
                pl.BlockSpec((tb, D), lambda i, j: (j, 0)),
                pl.BlockSpec((D, D), lambda i, j: (0, 0)),
                pl.BlockSpec((1, D), lambda i, j: (0, 0)),
                pl.BlockSpec((1, 1), lambda i, j: (0, 0)),
            ],
            out_specs=(
                pl.BlockSpec((tb, D), lambda i, j: (i, 0)),
                pl.BlockSpec((tb, D), lambda i, j: (j, 0)),
                pl.BlockSpec((tb, tb), lambda i, j: (i, j)),
            ),
            compiler_params=pltpu.CompilerParams(
                dimension_semantics=("arbitrary", "arbitrary"),
                vmem_limit_bytes=self._vmem_limit),
        )(v_pre, sel_tok_bf16, p["w_text"], p["b_text"], p["logit_scale"])
        if B_pad > B:
            vout, tout, logits = vout[:B], tout[:B], logits[:B, :B]
        return vout, tout, logits

    # --- jitted core ----------------------------------------------------------
    def _forward_core(self, text, video):
        B, T, C, H, W = video.shape
        F = C * H * W

        # mean-pool frames FIRST: the proxy ViT∘temporal∘adapter chain is one
        # folded linear map, and the temporal mean commutes with it (exact).
        x = video.reshape(B, T, F).astype(jnp.float32)
        x_pooled = jnp.mean(x, axis=1)                             # (B, F)
        if self.F_pad > F:
            x_pooled = jnp.pad(x_pooled, ((0, 0), (0, self.F_pad - F)))
        v_pre = self._vit_project(x_pooled.astype(jnp.bfloat16))   # (B, D)

        # hidden_state[arange(B), text.argmax(-1)] of a per-token-linear GPT
        # == embed+project only the argmax-position token (selection commutes).
        eot_idx = jnp.argmax(text, axis=-1)
        eot_tok = jnp.take_along_axis(text, eot_idx[:, None], axis=-1)[:, 0]
        sel_tok = jnp.take(self.params["tok_table"], eot_tok, axis=0)

        return self._fused_tail(v_pre, sel_tok.astype(jnp.bfloat16))

    # --- pure-JAX f32 reference (un-folded weights) ---------------------------
    def reference(self, text, video):
        r = self.ref_params
        B, T, C, H, W = video.shape
        x = video.reshape(B, T, C * H * W).astype(jnp.float32)
        frame = x @ r["w_vit"] + r["b_vit"]                       # per-frame ViT
        v = jnp.mean(frame, axis=1) @ r["w_temp"] + r["b_temp"]   # temporal enc.
        v = v @ r["w_vad"] + r["b_vad"]                           # video adapter
        v = v / jnp.linalg.norm(v, axis=-1, keepdims=True)
        eot = jnp.argmax(text, axis=-1)
        tok = jnp.take_along_axis(text, eot[:, None], axis=-1)[:, 0]
        t = jnp.take(r["tok_table"], tok, axis=0) @ r["w_gpt"] + r["b_gpt"]
        t = t @ r["w_tad"] + r["b_tad"]                           # text adapter
        t = t / jnp.linalg.norm(t, axis=-1, keepdims=True)
        scale = jnp.exp(r["logit_scale"][0, 0])
        return scale * v, t, scale * (v @ t.T)

    # --- forward --------------------------------------------------------------
    def forward(self, text, video, train=False, all_gather=True):
        if train:
            # TODO(synk): CrossEn loss definition is not provided in the module.
            raise NotImplementedError("train path (CrossEn loss) not implemented")

        v_scaled, t_norm, logits = self._core(text, video)

        if all_gather:
            # TODO(synk): AllGather is a cross-device collective; identity on a
            # single device here.
            pass

        video_features = [v_scaled]      # [logit_scale.exp() * video_embedding]
        text_features = t_norm
        return (video_features, text_features), logits


# ----------------------------------------------------------------------------
if __name__ == "__main__":
    B, T, C, H, W = 2, 4, 3, 16, 16
    D, L, VOCAB = 128, 8, 64             # D lane-dense (multiple of 128)

    key = jax.random.PRNGKey(0)
    kv, kt = jax.random.split(key)
    video = jax.random.normal(kv, (B, T, C, H, W), jnp.float32)
    text = jax.random.randint(kt, (B, L), 1, VOCAB, dtype=jnp.int32)

    model = NaiveCLIPPallas(frame_num=T, channels=C, height=H, width=W,
                            embed_dim=D, seq_len=L, vocab_size=VOCAB)

    (video_features, text_features), logits = model.forward(text, video)
    jax.block_until_ready(video_features[0])
    jax.block_until_ready(text_features)
    jax.block_until_ready(logits)

    assert video_features[0].shape == (B, D)
    assert text_features.shape == (B, D)
    assert logits.shape == (B, B)

    # tolerance-asserted pure-JAX reference: checks the offline weight folds,
    # the pooled-first / EOT-only rewrites and the bf16 MXU operands.
    ref_v, ref_t, ref_logits = model.reference(text, video)
    assert float(jnp.max(jnp.abs(video_features[0] - ref_v))) < 0.3
    assert float(jnp.max(jnp.abs(text_features - ref_t))) < 0.1
    assert float(jnp.max(jnp.abs(logits - ref_logits))) < 1.0

    print("KERNEL_OK")
</pallas_src>

<mosaic_0001>
module attributes {stable_mosaic.version = 11 : i64} {
  func.func @_vit_project_kernel(%arg0: i32, %arg1: i32, %arg2: memref<2x768xbf16, #tpu.memory_space<vmem>>, %arg3: memref<768x128xbf16, #tpu.memory_space<vmem>>, %arg4: memref<1x128xf32, #tpu.memory_space<vmem>>, %arg5: memref<2x128xf32, #tpu.memory_space<vmem>>) attributes {dimension_semantics = [#tpu.dimension_semantics<parallel>, #tpu.dimension_semantics<arbitrary>], iteration_bounds = array<i64: 1, 1>, scalar_prefetch = 0 : i64, scratch_operands = 0 : i64, tpu.core_type = #tpu.core_type<tc>, window_params = [{transform_indices = @transform_0, window_bounds = array<i64: 2, 768>}, {transform_indices = @transform_1, window_bounds = array<i64: 768, 128>}, {transform_indices = @transform_2, window_bounds = array<i64: 1, 128>}, {transform_indices = @transform_3, window_bounds = array<i64: 2, 128>}]} {
    %c0_i32 = arith.constant 0 : i32
    %0 = arith.cmpi eq, %arg1, %c0_i32 : i32
    %1 = arith.extui %0 : i1 to i32
    %c0_i32_0 = arith.constant 0 : i32
    %2 = arith.cmpi ne, %1, %c0_i32_0 : i32
    scf.if %2 {
      %cst_10 = arith.constant 0.000000e+00 : f32
      %12 = vector.broadcast %cst_10 : f32 to vector<2x128xf32>
      %c0_11 = arith.constant 0 : index
      %c0_12 = arith.constant 0 : index
      %13 = vector.load %arg5[%c0_11, %c0_12] : memref<2x128xf32, #tpu.memory_space<vmem>>, vector<2x128xf32>
      tpu.vector_store %arg5[%c0_11, %c0_12], %12 {strides = array<i32>} : memref<2x128xf32, #tpu.memory_space<vmem>>, vector<2x128xf32>,
    } else {
    }
    %c0 = arith.constant 0 : index
    %c0_1 = arith.constant 0 : index
    %3 = vector.load %arg5[%c0, %c0_1] : memref<2x128xf32, #tpu.memory_space<vmem>>, vector<2x128xf32>
    %c0_2 = arith.constant 0 : index
    %c0_3 = arith.constant 0 : index
    %4 = vector.load %arg2[%c0_2, %c0_3] : memref<2x768xbf16, #tpu.memory_space<vmem>>, vector<2x768xbf16>
    %c0_4 = arith.constant 0 : index
    %c0_5 = arith.constant 0 : index
    %5 = vector.load %arg3[%c0_4, %c0_5] : memref<768x128xbf16, #tpu.memory_space<vmem>>, vector<768x128xbf16>
    %cst = arith.constant dense<0.000000e+00> : vector<2x128xf32>
    %6 = tpu.matmul %4, %5, %cst {dimension_numbers = #tpu.dot_dimension_numbers<[1], [0], [0], [1], [0, 0, 1, 1], [], []>} : vector<2x768xbf16>, vector<768x128xbf16>, vector<2x128xf32> -> vector<2x128xf32>
    %7 = arith.addf %3, %6 : vector<2x128xf32>
    %c0_6 = arith.constant 0 : index
    %c0_7 = arith.constant 0 : index
    %8 = vector.load %arg5[%c0_6, %c0_7] : memref<2x128xf32, #tpu.memory_space<vmem>>, vector<2x128xf32>
    tpu.vector_store %arg5[%c0_6, %c0_7], %7 {strides = array<i32>} : memref<2x128xf32, #tpu.memory_space<vmem>>, vector<2x128xf32>,
    %c0_i32_8 = arith.constant 0 : i32
    %9 = arith.cmpi eq, %arg1, %c0_i32_8 : i32
    %10 = arith.extui %9 : i1 to i32
    %c0_i32_9 = arith.constant 0 : i32
    %11 = arith.cmpi ne, %10, %c0_i32_9 : i32
    scf.if %11 {
      %c0_10 = arith.constant 0 : index
      %c0_11 = arith.constant 0 : index
      %12 = vector.load %arg5[%c0_10, %c0_11] : memref<2x128xf32, #tpu.memory_space<vmem>>, vector<2x128xf32>
      %c0_12 = arith.constant 0 : index
      %c0_13 = arith.constant 0 : index
      %13 = vector.load %arg4[%c0_12, %c0_13] : memref<1x128xf32, #tpu.memory_space<vmem>>, vector<1x128xf32>
      %14 = vector.broadcast %13 : vector<1x128xf32> to vector<2x128xf32>
      %15 = arith.addf %12, %14 : vector<2x128xf32>
      %c0_14 = arith.constant 0 : index
      %c0_15 = arith.constant 0 : index
      %16 = vector.load %arg5[%c0_14, %c0_15] : memref<2x128xf32, #tpu.memory_space<vmem>>, vector<2x128xf32>
      tpu.vector_store %arg5[%c0_14, %c0_15], %15 {strides = array<i32>} : memref<2x128xf32, #tpu.memory_space<vmem>>, vector<2x128xf32>,
    } else {
    }
    return
  }
  func.func @transform_0(%arg0: i32, %arg1: i32) -> (i32, i32) {
    %c0_i32 = arith.constant 0 : i32
    %c0_i32_0 = arith.constant 0 : i32
    return %c0_i32, %arg1 : i32, i32
  }
  func.func @transform_1(%arg0: i32, %arg1: i32) -> (i32, i32) {
    %c0_i32 = arith.constant 0 : i32
    return %arg1, %arg0 : i32, i32
  }
  func.func @transform_2(%arg0: i32, %arg1: i32) -> (i32, i32) {
    %c0_i32 = arith.constant 0 : i32
    %c0_i32_0 = arith.constant 0 : i32
    return %c0_i32, %arg0 : i32, i32
  }
  func.func @transform_3(%arg0: i32, %arg1: i32) -> (i32, i32) {
    %c0_i32 = arith.constant 0 : i32
    %c0_i32_0 = arith.constant 0 : i32
    return %c0_i32, %arg0 : i32, i32
  }
}

module attributes {stable_mosaic.version = 11 : i64} {
  func.func @_clip_tail_kernel(%arg0: i32, %arg1: i32, %arg2: memref<2x128xf32, #tpu.memory_space<vmem>>, %arg3: memref<2x128xbf16, #tpu.memory_space<vmem>>, %arg4: memref<128x128xbf16, #tpu.memory_space<vmem>>, %arg5: memref<1x128xf32, #tpu.memory_space<vmem>>, %arg6: memref<1x1xf32, #tpu.memory_space<vmem>>, %arg7: memref<2x128xf32, #tpu.memory_space<vmem>>, %arg8: memref<2x128xf32, #tpu.memory_space<vmem>>, %arg9: memref<2x2xf32, #tpu.memory_space<vmem>>) attributes {dimension_semantics = [#tpu.dimension_semantics<arbitrary>, #tpu.dimension_semantics<arbitrary>], iteration_bounds = array<i64: 1, 1>, scalar_prefetch = 0 : i64, scratch_operands = 0 : i64, tpu.core_type = #tpu.core_type<tc>, window_params = [{transform_indices = @transform_0, window_bounds = array<i64: 2, 128>}, {transform_indices = @transform_1, window_bounds = array<i64: 2, 128>}, {pipeline_mode = #tpu.pipeline_mode<synchronous>, transform_indices = @transform_2, window_bounds = array<i64: 128, 128>}, {pipeline_mode = #tpu.pipeline_mode<synchronous>, transform_indices = @transform_3, window_bounds = array<i64: 1, 128>}, {pipeline_mode = #tpu.pipeline_mode<synchronous>, transform_indices = @transform_4, window_bounds = array<i64: 1, 1>}, {transform_indices = @transform_5, window_bounds = array<i64: 2, 128>}, {transform_indices = @transform_6, window_bounds = array<i64: 2, 128>}, {transform_indices = @transform_7, window_bounds = array<i64: 2, 2>}]} {
    %c0 = arith.constant 0 : index
    %c0_0 = arith.constant 0 : index
    %0 = vector.load %arg2[%c0, %c0_0] : memref<2x128xf32, #tpu.memory_space<vmem>>, vector<2x128xf32>
    %1 = arith.mulf %0, %0 : vector<2x128xf32>
    %cst = arith.constant dense<0.000000e+00> : vector<2xf32>
    %2 = vector.multi_reduction <add>, %1, %cst [1] : vector<2x128xf32> to vector<2xf32>
    %3 = vector.shape_cast %2 : vector<2xf32> to vector<2x1xf32>
    %cst_1 = arith.constant 9.99999996E-13 : f32
    %4 = vector.broadcast %cst_1 : f32 to vector<2x1xf32>
    %5 = arith.addf %3, %4 : vector<2x1xf32>
    %6 = math.rsqrt %5 : vector<2x1xf32>
    %7 = vector.broadcast %6 : vector<2x1xf32> to vector<2x128xf32>
    %8 = arith.mulf %0, %7 : vector<2x128xf32>
    %c0_2 = arith.constant 0 : index
    %c0_3 = arith.constant 0 : index
    %9 = vector.load %arg3[%c0_2, %c0_3] : memref<2x128xbf16, #tpu.memory_space<vmem>>, vector<2x128xbf16>
    %c0_4 = arith.constant 0 : index
    %c0_5 = arith.constant 0 : index
    %10 = vector.load %arg4[%c0_4, %c0_5] : memref<128x128xbf16, #tpu.memory_space<vmem>>, vector<128x128xbf16>
    %cst_6 = arith.constant dense<0.000000e+00> : vector<2x128xf32>
    %11 = tpu.matmul %9, %10, %cst_6 {dimension_numbers = #tpu.dot_dimension_numbers<[1], [0], [0], [1], [0, 0, 1, 1], [], []>} : vector<2x128xbf16>, vector<128x128xbf16>, vector<2x128xf32> -> vector<2x128xf32>
    %c0_7 = arith.constant 0 : index
    %c0_8 = arith.constant 0 : index
    %12 = vector.load %arg5[%c0_7, %c0_8] : memref<1x128xf32, #tpu.memory_space<vmem>>, vector<1x128xf32>
    %13 = vector.broadcast %12 : vector<1x128xf32> to vector<2x128xf32>
    %14 = arith.addf %11, %13 : vector<2x128xf32>
    %15 = arith.mulf %14, %14 : vector<2x128xf32>
    %cst_9 = arith.constant dense<0.000000e+00> : vector<2xf32>
    %16 = vector.multi_reduction <add>, %15, %cst_9 [1] : vector<2x128xf32> to vector<2xf32>
    %17 = vector.shape_cast %16 : vector<2xf32> to vector<2x1xf32>
    %cst_10 = arith.constant 9.99999996E-13 : f32
    %18 = vector.broadcast %cst_10 : f32 to vector<2x1xf32>
    %19 = arith.addf %17, %18 : vector<2x1xf32>
    %20 = math.rsqrt %19 : vector<2x1xf32>
    %21 = vector.broadcast %20 : vector<2x1xf32> to vector<2x128xf32>
    %22 = arith.mulf %14, %21 : vector<2x128xf32>
    %c0_11 = arith.constant 0 : index
    %c0_12 = arith.constant 0 : index
    %23 = vector.load %arg6[%c0_11, %c0_12] : memref<1x1xf32, #tpu.memory_space<vmem>>, vector<1x1xf32>
    %24 = math.exp %23 : vector<1x1xf32>
    %25 = vector.broadcast %24 : vector<1x1xf32> to vector<2x128xf32>
    %26 = arith.mulf %25, %8 : vector<2x128xf32>
    %c0_13 = arith.constant 0 : index
    %c0_14 = arith.constant 0 : index
    %27 = vector.load %arg7[%c0_13, %c0_14] : memref<2x128xf32, #tpu.memory_space<vmem>>, vector<2x128xf32>
    tpu.vector_store %arg7[%c0_13, %c0_14], %26 {strides = array<i32>} : memref<2x128xf32, #tpu.memory_space<vmem>>, vector<2x128xf32>,
    %c0_15 = arith.constant 0 : index
    %c0_16 = arith.constant 0 : index
    %28 = vector.load %arg8[%c0_15, %c0_16] : memref<2x128xf32, #tpu.memory_space<vmem>>, vector<2x128xf32>
    tpu.vector_store %arg8[%c0_15, %c0_16], %22 {strides = array<i32>} : memref<2x128xf32, #tpu.memory_space<vmem>>, vector<2x128xf32>,
    %29 = arith.truncf %8 : vector<2x128xf32> to vector<2x128xbf16>
    %30 = arith.truncf %22 : vector<2x128xf32> to vector<2x128xbf16>
    %cst_17 = arith.constant dense<0.000000e+00> : vector<2x2xf32>
    %31 = tpu.matmul %29, %30, %cst_17 {dimension_numbers = #tpu.dot_dimension_numbers<[1], [1], [0], [0], [0, 0, 1, 0], [], []>} : vector<2x128xbf16>, vector<2x128xbf16>, vector<2x2xf32> -> vector<2x2xf32>
    %32 = vector.broadcast %24 : vector<1x1xf32> to vector<2x2xf32>
    %33 = arith.mulf %32, %31 : vector<2x2xf32>
    %c0_18 = arith.constant 0 : index
    %c0_19 = arith.constant 0 : index
    %34 = vector.load %arg9[%c0_18, %c0_19] : memref<2x2xf32, #tpu.memory_space<vmem>>, vector<2x2xf32>
    tpu.vector_store %arg9[%c0_18, %c0_19], %33 {strides = array<i32>} : memref<2x2xf32, #tpu.memory_space<vmem>>, vector<2x2xf32>,
    return
  }
  func.func @transform_0(%arg0: i32, %arg1: i32) -> (i32, i32) {
    %c0_i32 = arith.constant 0 : i32
    %c0_i32_0 = arith.constant 0 : i32
    return %arg0, %c0_i32 : i32, i32
  }
  func.func @transform_1(%arg0: i32, %arg1: i32) -> (i32, i32) {
    %c0_i32 = arith.constant 0 : i32
    %c0_i32_0 = arith.constant 0 : i32
    return %arg1, %c0_i32 : i32, i32
  }
  func.func @transform_2(%arg0: i32, %arg1: i32) -> (i32, i32) {
    %c0_i32 = arith.constant 0 : i32
    %c0_i32_0 = arith.constant 0 : i32
    %c0_i32_1 = arith.constant 0 : i32
    return %c0_i32, %c0_i32_0 : i32, i32
  }
  func.func @transform_3(%arg0: i32, %arg1: i32) -> (i32, i32) {
    %c0_i32 = arith.constant 0 : i32
    %c0_i32_0 = arith.constant 0 : i32
    %c0_i32_1 = arith.constant 0 : i32
    return %c0_i32, %c0_i32_0 : i32, i32
  }
  func.func @transform_4(%arg0: i32, %arg1: i32) -> (i32, i32) {
    %c0_i32 = arith.constant 0 : i32
    %c0_i32_0 = arith.constant 0 : i32
    %c0_i32_1 = arith.constant 0 : i32
    return %c0_i32, %c0_i32_0 : i32, i32
  }
  func.func @transform_5(%arg0: i32, %arg1: i32) -> (i32, i32) {
    %c0_i32 = arith.constant 0 : i32
    %c0_i32_0 = arith.constant 0 : i32
    return %arg0, %c0_i32 : i32, i32
  }
  func.func @transform_6(%arg0: i32, %arg1: i32) -> (i32, i32) {
    %c0_i32 = arith.constant 0 : i32
    %c0_i32_0 = arith.constant 0 : i32
    return %arg1, %c0_i32 : i32, i32
  }
  func.func @transform_7(%arg0: i32, %arg1: i32) -> (i32, i32) {
    %c0_i32 = arith.constant 0 : i32
    return %arg0, %arg1 : i32, i32
  }
}

</mosaic_0001>

<llo_original>
// kernel: _forward_core.2
$region0: #{_forward_core.2}
  #allocation0 [shape = 'u32[]', space=smem, size = 0x4, offset = 0x4, fixed_abs, tag = 'smem constant byte address 0x4 - core index']
  #allocation1 [shape = 'u32[72,128]{1,0:T(1,128)}', space=vmem, size = 0x9000, scoped, tag = 'internal scratch']
  %s0 = inlined_call_operand.vmem [shape: bf16[2,768], index: 0, kind: input, shape index: {}]
  %s1 = inlined_call_operand.vmem [shape: bf16[768,128], index: 1, kind: input, shape index: {}]
  %s2 = inlined_call_operand.vmem [shape: f32[1,128], index: 2, kind: input, shape index: {}]
  %s3 = inlined_call_operand.vmem [shape: f32[2,128], index: 3, kind: output, shape index: {}]
  %s4 = sld [smem:[#allocation0]]
  $region30: #{_forward_core.2} parent=0
    _
  %s6 = ssub.s32 1, %s4
  %s7 = scalar_select 0, %s6, %s4
  // Predicated region
  $region2: #{_forward_core.2} parent=0 // pred_check
    _
  $region3: #{_forward_core.2} parent=0 // pred_check_branch
    %9 = sbr.rel (0) target = $region5
  $region4: #{_forward_core.2} parent=0 // pred_region
    _
  $region5: #{_forward_core.2} parent=0 // pred_fallthru
    _
  // Predicated region
  $region6: #{_forward_core.2} parent=0 // pred_check
    _
  $region7: #{_forward_core.2} parent=0 // pred_check_branch
    %11 = sbr.rel (0) target = $region9
  $region8: #{_forward_core.2} parent=0 // pred_region
    _
  $region9: #{_forward_core.2} parent=0 // pred_fallthru
    _
  // Predicated region
  $region10: #{_forward_core.2} parent=0 // pred_check
    _
  $region11: #{_forward_core.2} parent=0 // pred_check_branch
    %13 = sbr.rel (0) target = $region13
  $region12: #{_forward_core.2} parent=0 // pred_region
    _
  $region13: #{_forward_core.2} parent=0 // pred_fallthru
    _
  %p14 = scmp.eq.s32.totalorder 0, 0
  // Predicated region
  $region14: #{_forward_core.2} parent=0 // pred_check
    %p15 = pneg %p14
  $region15: #{_forward_core.2} parent=0 // pred_check_branch
    %17 = sbr.rel (%p15) target = $region17
  $region16: #{_forward_core.2} parent=0 // pred_region
    %18 = vst [vmem:[%s3] sm:$0x3] 0.0
  $region17: #{_forward_core.2} parent=0 // pred_fallthru
    _
  %v19 = vld [vmem:[%s3] sm:$0x3]
  %v20 = vld [vmem:[%s0] sm:$0x3f]
  %v21 = vld [vmem:[%s1] sm:$0xf]
  %v22 = vld [vmem:[%s1 + $0x4] sm:$0xf]
  %v23 = vld [vmem:[%s1 + $0x8] sm:$0xf]
  %v24 = vld [vmem:[%s1 + $0xc] sm:$0xf]
  %v25 = vld [vmem:[%s1 + $0x10] sm:$0xf]
  %v26 = vld [vmem:[%s1 + $0x14] sm:$0xf]
  %v27 = vld [vmem:[%s1 + $0x18] sm:$0xf]
  %v28 = vld [vmem:[%s1 + $0x1c] sm:$0xf]
  %v29 = vld [vmem:[%s1 + $0x20] sm:$0xf]
  %v30 = vld [vmem:[%s1 + $0x24] sm:$0xf]
  %v31 = vld [vmem:[%s1 + $0x28] sm:$0xf]
  %v32 = vld [vmem:[%s1 + $0x2c] sm:$0xf]
  %v33 = vld [vmem:[%s1 + $0x30] sm:$0xf]
  %v34 = vld [vmem:[%s1 + $0x34] sm:$0xf]
  %v35 = vld [vmem:[%s1 + $0x38] sm:$0xf]
  %v36 = vld [vmem:[%s1 + $0x3c] sm:$0xf]
  %v37 = vld [vmem:[%s1 + $0x40] sm:$0xf]
  %v38 = vld [vmem:[%s1 + $0x44] sm:$0xf]
  %v39 = vld [vmem:[%s1 + $0x48] sm:$0xf]
  %v40 = vld [vmem:[%s1 + $0x4c] sm:$0xf]
  %v41 = vld [vmem:[%s1 + $0x50] sm:$0xf]
  %v42 = vld [vmem:[%s1 + $0x54] sm:$0xf]
  %v43 = vld [vmem:[%s1 + $0x58] sm:$0xf]
  %v44 = vld [vmem:[%s1 + $0x5c] sm:$0xf]
  %v45 = vld [vmem:[%s1 + $0x60] sm:$0xf]
  %v46 = vld [vmem:[%s1 + $0x64] sm:$0xf]
  %v47 = vld [vmem:[%s1 + $0x68] sm:$0xf]
  %v48 = vld [vmem:[%s1 + $0x6c] sm:$0xf]
  %v49 = vld [vmem:[%s1 + $0x70] sm:$0xf]
  %v50 = vld [vmem:[%s1 + $0x74] sm:$0xf]
  %v51 = vld [vmem:[%s1 + $0x78] sm:$0xf]
  %v52 = vld [vmem:[%s1 + $0x7c] sm:$0xf]
  %v53 = vld [vmem:[%s1 + $0x80] sm:$0xf]
  %v54 = vld [vmem:[%s1 + $0x84] sm:$0xf]
  %v55 = vld [vmem:[%s1 + $0x88] sm:$0xf]
  %v56 = vld [vmem:[%s1 + $0x8c] sm:$0xf]
  %v57 = vld [vmem:[%s1 + $0x90] sm:$0xf]
  %v58 = vld [vmem:[%s1 + $0x94] sm:$0xf]
  %v59 = vld [vmem:[%s1 + $0x98] sm:$0xf]
  %v60 = vld [vmem:[%s1 + $0x9c] sm:$0xf]
  %v61 = vld [vmem:[%s1 + $0xa0] sm:$0xf]
  %v62 = vld [vmem:[%s1 + $0xa4] sm:$0xf]
  %v63 = vld [vmem:[%s1 + $0xa8] sm:$0xf]
  %v64 = vld [vmem:[%s1 + $0xac] sm:$0xf]
  %v65 = vld [vmem:[%s1 + $0xb0] sm:$0xf]
  %v66 = vld [vmem:[%s1 + $0xb4] sm:$0xf]
  %v67 = vld [vmem:[%s1 + $0xb8] sm:$0xf]
  %v68 = vld [vmem:[%s1 + $0xbc] sm:$0xf]
  %v69 = vld [vmem:[%s1 + $0xc0] sm:$0xf]
  %v70 = vld [vmem:[%s1 + $0xc4] sm:$0xf]
  %v71 = vld [vmem:[%s1 + $0xc8] sm:$0xf]
  %v72 = vld [vmem:[%s1 + $0xcc] sm:$0xf]
  %v73 = vld [vmem:[%s1 + $0xd0] sm:$0xf]
  %v74 = vld [vmem:[%s1 + $0xd4] sm:$0xf]
  %v75 = vld [vmem:[%s1 + $0xd8] sm:$0xf]
  %v76 = vld [vmem:[%s1 + $0xdc] sm:$0xf]
  %v77 = vld [vmem:[%s1 + $0xe0] sm:$0xf]
  %v78 = vld [vmem:[%s1 + $0xe4] sm:$0xf]
  %v79 = vld [vmem:[%s1 + $0xe8] sm:$0xf]
  %v80 = vld [vmem:[%s1 + $0xec] sm:$0xf]
  %v81 = vld [vmem:[%s1 + $0xf0] sm:$0xf]
  %v82 = vld [vmem:[%s1 + $0xf4] sm:$0xf]
  %v83 = vld [vmem:[%s1 + $0xf8] sm:$0xf]
  %v84 = vld [vmem:[%s1 + $0xfc] sm:$0xf]
  %v85 = vld [vmem:[%s1 + $0x100] sm:$0xf]
  %v86 = vld [vmem:[%s1 + $0x104] sm:$0xf]
  %v87 = vld [vmem:[%s1 + $0x108] sm:$0xf]
  %v88 = vld [vmem:[%s1 + $0x10c] sm:$0xf]
  %v89 = vld [vmem:[%s1 + $0x110] sm:$0xf]
  %v90 = vld [vmem:[%s1 + $0x114] sm:$0xf]
  %v91 = vld [vmem:[%s1 + $0x118] sm:$0xf]
  %v92 = vld [vmem:[%s1 + $0x11c] sm:$0xf]
  %v93 = vld [vmem:[%s1 + $0x120] sm:$0xf]
  %v94 = vld [vmem:[%s1 + $0x124] sm:$0xf]
  %v95 = vld [vmem:[%s1 + $0x128] sm:$0xf]
  %v96 = vld [vmem:[%s1 + $0x12c] sm:$0xf]
  %v97 = vld [vmem:[%s1 + $0x130] sm:$0xf]
  %v98 = vld [vmem:[%s1 + $0x134] sm:$0xf]
  %v99 = vld [vmem:[%s1 + $0x138] sm:$0xf]
  %v100 = vld [vmem:[%s1 + $0x13c] sm:$0xf]
  %v101 = vld [vmem:[%s1 + $0x140] sm:$0xf]
  %v102 = vld [vmem:[%s1 + $0x144] sm:$0xf]
  %v103 = vld [vmem:[%s1 + $0x148] sm:$0xf]
  %v104 = vld [vmem:[%s1 + $0x14c] sm:$0xf]
  %v105 = vld [vmem:[%s1 + $0x150] sm:$0xf]
  %v106 = vld [vmem:[%s1 + $0x154] sm:$0xf]
  %v107 = vld [vmem:[%s1 + $0x158] sm:$0xf]
  %v108 = vld [vmem:[%s1 + $0x15c] sm:$0xf]
  %v109 = vld [vmem:[%s1 + $0x160] sm:$0xf]
  %v110 = vld [vmem:[%s1 + $0x164] sm:$0xf]
  %v111 = vld [vmem:[%s1 + $0x168] sm:$0xf]
  %v112 = vld [vmem:[%s1 + $0x16c] sm:$0xf]
  %v113 = vld [vmem:[%s1 + $0x170] sm:$0xf]
  %v114 = vld [vmem:[%s1 + $0x174] sm:$0xf]
  %v115 = vld [vmem:[%s1 + $0x178] sm:$0xf]
  %v116 = vld [vmem:[%s1 + $0x17c] sm:$0xf]
  %118 = vst [vmem:[#allocation1] ss:$9 sm:$0xff] %v20
  %v119 = vld [vmem:[#allocation1] sm:$0xff]
  %v120 = vld [vmem:[#allocation1 + $0x9] sm:$0xff]
  %v121 = vld [vmem:[#allocation1 + $0x12] sm:$0xff]
  %v122 = vld [vmem:[#allocation1 + $0x1b] sm:$0xff]
  %v123 = vld [vmem:[#allocation1 + $0x24] sm:$0xff]
  %v124 = vld [vmem:[#allocation1 + $0x2d] sm:$0xff]
  %v227 = vunpack.c.l.b16 %v21
  %v228 = vunpack.c.l.b16 %v22
  %v229 = vunpack.c.l.b16 %v23
  %v230 = vunpack.c.l.b16 %v24
  %v231 = vunpack.c.l.b16 %v25
  %v232 = vunpack.c.l.b16 %v26
  %v233 = vunpack.c.l.b16 %v27
  %v234 = vunpack.c.l.b16 %v28
  %v235 = vunpack.c.l.b16 %v29
  %v236 = vunpack.c.l.b16 %v30
  %v237 = vunpack.c.l.b16 %v31
  %v238 = vunpack.c.l.b16 %v32
  %v239 = vunpack.c.l.b16 %v33
  %v240 = vunpack.c.l.b16 %v34
  %v241 = vunpack.c.l.b16 %v35
  %v242 = vunpack.c.l.b16 %v36
  %v243 = vunpack.c.l.b16 %v37
  %v244 = vunpack.c.l.b16 %v38
  %v245 = vunpack.c.l.b16 %v39
  %v246 = vunpack.c.l.b16 %v40
  %v247 = vunpack.c.l.b16 %v41
  %v248 = vunpack.c.l.b16 %v42
  %v249 = vunpack.c.l.b16 %v43
  %v250 = vunpack.c.l.b16 %v44
  %v251 = vunpack.c.l.b16 %v45
  %v252 = vunpack.c.l.b16 %v46
  %v253 = vunpack.c.l.b16 %v47
  %v254 = vunpack.c.l.b16 %v48
  %v255 = vunpack.c.l.b16 %v49
  %v256 = vunpack.c.l.b16 %v50
  %v257 = vunpack.c.l.b16 %v51
  %v258 = vunpack.c.l.b16 %v52
  %v259 = vunpack.c.l.b16 %v53
  %v260 = vunpack.c.l.b16 %v54
  %v261 = vunpack.c.l.b16 %v55
  %v262 = vunpack.c.l.b16 %v56
  %v263 = vunpack.c.l.b16 %v57
  %v264 = vunpack.c.l.b16 %v58
  %v265 = vunpack.c.l.b16 %v59
  %v266 = vunpack.c.l.b16 %v60
  %v267 = vunpack.c.l.b16 %v61
  %v268 = vunpack.c.l.b16 %v62
  %v269 = vunpack.c.l.b16 %v63
  %v270 = vunpack.c.l.b16 %v64
  %v271 = vunpack.c.l.b16 %v65
  %v272 = vunpack.c.l.b16 %v66
  %v273 = vunpack.c.l.b16 %v67
  %v274 = vunpack.c.l.b16 %v68
  %v275 = vunpack.c.l.b16 %v69
  %v276 = vunpack.c.l.b16 %v70
  %v277 = vunpack.c.l.b16 %v71
  %v278 = vunpack.c.l.b16 %v72
  %v279 = vunpack.c.l.b16 %v73
  %v280 = vunpack.c.l.b16 %v74
  %v281 = vunpack.c.l.b16 %v75
  %v282 = vunpack.c.l.b16 %v76
  %v283 = vunpack.c.l.b16 %v77
  %v284 = vunpack.c.l.b16 %v78
  %v285 = vunpack.c.l.b16 %v79
  %v286 = vunpack.c.l.b16 %v80
  %v287 = vunpack.c.l.b16 %v81
  %v288 = vunpack.c.l.b16 %v82
  %v289 = vunpack.c.l.b16 %v83
  %v290 = vunpack.c.l.b16 %v84
  %v291 = vunpack.c.l.b16 %v85
  %v292 = vunpack.c.l.b16 %v86
  %v293 = vunpack.c.l.b16 %v87
  %v294 = vunpack.c.l.b16 %v88
  %v295 = vunpack.c.l.b16 %v89
  %v296 = vunpack.c.l.b16 %v90
  %v297 = vunpack.c.l.b16 %v91
  %v298 = vunpack.c.l.b16 %v92
  %v299 = vunpack.c.l.b16 %v93
  %v300 = vunpack.c.l.b16 %v94
  %v301 = vunpack.c.l.b16 %v95
  %v302 = vunpack.c.l.b16 %v96
  %v303 = vunpack.c.l.b16 %v97
  %v304 = vunpack.c.l.b16 %v98
  %v305 = vunpack.c.l.b16 %v99
  %v306 = vunpack.c.l.b16 %v100
  %v307 = vunpack.c.l.b16 %v101
  %v308 = vunpack.c.l.b16 %v102
  %v309 = vunpack.c.l.b16 %v103
  %v310 = vunpack.c.l.b16 %v104
  %v311 = vunpack.c.l.b16 %v105
  %v312 = vunpack.c.l.b16 %v106
  %v313 = vunpack.c.l.b16 %v107
  %v314 = vunpack.c.l.b16 %v108
  %v315 = vunpack.c.l.b16 %v109
  %v316 = vunpack.c.l.b16 %v110
  %v317 = vunpack.c.l.b16 %v111
  %v318 = vunpack.c.l.b16 %v112
  %v319 = vunpack.c.l.b16 %v113
  %v320 = vunpack.c.l.b16 %v114
  %v321 = vunpack.c.l.b16 %v115
  %v322 = vunpack.c.l.b16 %v116
  %v323 = vpack.c.b16 %v228, %v227
  %v324 = vpack.c.b16 %v230, %v229
  %v325 = vpack.c.b16 %v232, %v231
  %v326 = vpack.c.b16 %v234, %v233
  %v327 = vpack.c.b16 %v236, %v235
  %v328 = vpack.c.b16 %v238, %v237
  %v329 = vpack.c.b16 %v240, %v239
  %v330 = vpack.c.b16 %v242, %v241
  %v331 = vpack.c.b16 %v244, %v243
  %v332 = vpack.c.b16 %v246, %v245
  %v333 = vpack.c.b16 %v248, %v247
  %v334 = vpack.c.b16 %v250, %v249
  %v335 = vpack.c.b16 %v252, %v251
  %v336 = vpack.c.b16 %v254, %v253
  %v337 = vpack.c.b16 %v256, %v255
  %v338 = vpack.c.b16 %v258, %v257
  %v339 = vpack.c.b16 %v260, %v259
  %v340 = vpack.c.b16 %v262, %v261
  %v341 = vpack.c.b16 %v264, %v263
  %v342 = vpack.c.b16 %v266, %v265
  %v343 = vpack.c.b16 %v268, %v267
  %v344 = vpack.c.b16 %v270, %v269
  %v345 = vpack.c.b16 %v272, %v271
  %v346 = vpack.c.b16 %v274, %v273
  %v347 = vpack.c.b16 %v276, %v275
  %v348 = vpack.c.b16 %v278, %v277
  %v349 = vpack.c.b16 %v280, %v279
  %v350 = vpack.c.b16 %v282, %v281
  %v351 = vpack.c.b16 %v284, %v283
  %v352 = vpack.c.b16 %v286, %v285
  %v353 = vpack.c.b16 %v288, %v287
  %v354 = vpack.c.b16 %v290, %v289
  %v355 = vpack.c.b16 %v292, %v291
  %v356 = vpack.c.b16 %v294, %v293
  %v357 = vpack.c.b16 %v296, %v295
  %v358 = vpack.c.b16 %v298, %v297
  %v359 = vpack.c.b16 %v300, %v299
  %v360 = vpack.c.b16 %v302, %v301
  %v361 = vpack.c.b16 %v304, %v303
  %v362 = vpack.c.b16 %v306, %v305
  %v363 = vpack.c.b16 %v308, %v307
  %v364 = vpack.c.b16 %v310, %v309
  %v365 = vpack.c.b16 %v312, %v311
  %v366 = vpack.c.b16 %v314, %v313
  %v367 = vpack.c.b16 %v316, %v315
  %v368 = vpack.c.b16 %v318, %v317
  %v369 = vpack.c.b16 %v320, %v319
  %v370 = vpack.c.b16 %v322, %v321
  %419 = vmatpush.bf16.msra.mxu0 %v330
  %420 = vmatpush.bf16.msra.mxu0 %v329
  %421 = vmatpush.bf16.msra.mxu0 %v328
  %422 = vmatpush.bf16.msra.mxu0 %v327
  %423 = vmatpush.bf16.msra.mxu0 %v326
  %424 = vmatpush.bf16.msra.mxu0 %v325
  %425 = vmatpush.bf16.msra.mxu0 %v324
  %426 = vmatpush.bf16.msra.mxu0 %v323
  %427 = vmatmul.bf16.gmra.mxu0 %v119
  %v428 = vpop.f32.mrf.mxu0
  %v429 = vadd.f32 0.0, %v428
  %v430 = vpop.f32.mrf.mxu0
  %431 = vdwg.mxu0
  %432 = vmatpush.bf16.msra.mxu0 %v338
  %433 = vmatpush.bf16.msra.mxu0 %v337
  %434 = vmatpush.bf16.msra.mxu0 %v336
  %435 = vmatpush.bf16.msra.mxu0 %v335
  %436 = vmatpush.bf16.msra.mxu0 %v334
  %437 = vmatpush.bf16.msra.mxu0 %v333
  %438 = vmatpush.bf16.msra.mxu0 %v332
  %439 = vmatpush.bf16.msra.mxu0 %v331
  %440 = vmatmul.bf16.gmra.mxu0 %v120
  %v441 = vpop.f32.mrf.mxu0
  %v442 = vadd.f32 %v429, %v441
  %v443 = vpop.f32.mrf.mxu0
  %444 = vdwg.mxu0
  %445 = vmatpush.bf16.msra.mxu0 %v346
  %446 = vmatpush.bf16.msra.mxu0 %v345
  %447 = vmatpush.bf16.msra.mxu0 %v344
  %448 = vmatpush.bf16.msra.mxu0 %v343
  %449 = vmatpush.bf16.msra.mxu0 %v342
  %450 = vmatpush.bf16.msra.mxu0 %v341
  %451 = vmatpush.bf16.msra.mxu0 %v340
  %452 = vmatpush.bf16.msra.mxu0 %v339
  %453 = vmatmul.bf16.gmra.mxu0 %v121
  %v454 = vpop.f32.mrf.mxu0
  %v455 = vadd.f32 %v442, %v454
  %v456 = vpop.f32.mrf.mxu0
  %457 = vdwg.mxu0
  %458 = vmatpush.bf16.msra.mxu0 %v354
  %459 = vmatpush.bf16.msra.mxu0 %v353
  %460 = vmatpush.bf16.msra.mxu0 %v352
  %461 = vmatpush.bf16.msra.mxu0 %v351
  %462 = vmatpush.bf16.msra.mxu0 %v350
  %463 = vmatpush.bf16.msra.mxu0 %v349
  %464 = vmatpush.bf16.msra.mxu0 %v348
  %465 = vmatpush.bf16.msra.mxu0 %v347
  %466 = vmatmul.bf16.gmra.mxu0 %v122
  %v467 = vpop.f32.mrf.mxu0
  %v468 = vadd.f32 %v455, %v467
  %v469 = vpop.f32.mrf.mxu0
  %470 = vdwg.mxu0
  %471 = vmatpush.bf16.msra.mxu0 %v362
  %472 = vmatpush.bf16.msra.mxu0 %v361
  %473 = vmatpush.bf16.msra.mxu0 %v360
  %474 = vmatpush.bf16.msra.mxu0 %v359
  %475 = vmatpush.bf16.msra.mxu0 %v358
  %476 = vmatpush.bf16.msra.mxu0 %v357
  %477 = vmatpush.bf16.msra.mxu0 %v356
  %478 = vmatpush.bf16.msra.mxu0 %v355
  %479 = vmatmul.bf16.gmra.mxu0 %v123
  %v480 = vpop.f32.mrf.mxu0
  %v481 = vadd.f32 %v468, %v480
  %v482 = vpop.f32.mrf.mxu0
  %483 = vdwg.mxu0
  %484 = vmatpush.bf16.msra.mxu0 %v370
  %485 = vmatpush.bf16.msra.mxu0 %v369
  %486 = vmatpush.bf16.msra.mxu0 %v368
  %487 = vmatpush.bf16.msra.mxu0 %v367
  %488 = vmatpush.bf16.msra.mxu0 %v366
  %489 = vmatpush.bf16.msra.mxu0 %v365
  %490 = vmatpush.bf16.msra.mxu0 %v364
  %491 = vmatpush.bf16.msra.mxu0 %v363
  %492 = vmatmul.bf16.gmra.mxu0 %v124
  %v493 = vpop.f32.mrf.mxu0
  %v494 = vadd.f32 %v481, %v493
  %v495 = vpop.f32.mrf.mxu0
  %496 = vdwg.mxu0
  %v497 = vadd.f32 %v19, %v494
  %498 = vst [vmem:[%s3] sm:$0x3] %v497
  // Predicated region
  $region18: #{_forward_core.2} parent=0 // pred_check
    %p499 = pneg %p14
  $region19: #{_forward_core.2} parent=0 // pred_check_branch
    %501 = sbr.rel (%p499) target = $region21
  $region20: #{_forward_core.2} parent=0 // pred_region
    %v502 = vld [vmem:[%s3] sm:$0x3]
    %v503 = vld [vmem:[%s2] sm:$0x1]
    %v505 = vperm.slane %v503, 0
    %v507 = vadd.f32 %v502, %v505
    %508 = vst [vmem:[%s3] sm:$0x3] %v507
  $region21: #{_forward_core.2} parent=0 // pred_fallthru
    _
  // Predicated region
  $region22: #{_forward_core.2} parent=0 // pred_check
    _
  $region23: #{_forward_core.2} parent=0 // pred_check_branch
    %510 = sbr.rel (0) target = $region25
  $region24: #{_forward_core.2} parent=0 // pred_region
    _
  $region25: #{_forward_core.2} parent=0 // pred_fallthru
    _
  // Predicated region
  $region26: #{_forward_core.2} parent=0 // pred_check
    _
  $region27: #{_forward_core.2} parent=0 // pred_check_branch
    %512 = sbr.rel (0) target = $region29
  $region28: #{_forward_core.2} parent=0 // pred_region
    _
  $region29: #{_forward_core.2} parent=0 // pred_fallthru
    _

// kernel: _forward_core.3
$region0: #{_forward_core.3}
  #allocation0 [shape = 'u32[]', space=smem, size = 0x4, offset = 0x4, fixed_abs, tag = 'smem constant byte address 0x4 - core index']
  #allocation1 [shape = 'u32[72,128]{1,0:T(1,128)}', space=vmem, size = 0x9000, scoped, tag = 'internal scratch']
  #allocation2 [shape = 'f32[1,1]{1,0:T(1,128)S(1)}', space=vmem, size = 0x200, scoped, tag = 'scoped memory for _forward_core.3']
  %s0 = inlined_call_operand.vmem [shape: f32[2,128], index: 0, kind: input, shape index: {}]
  %s1 = inlined_call_operand.vmem [shape: bf16[2,128], index: 1, kind: input, shape index: {}]
  %s2 = inlined_call_operand.vmem [shape: bf16[128,128], index: 2, kind: input, shape index: {}]
  %s3 = inlined_call_operand.vmem [shape: f32[1,128], index: 3, kind: input, shape index: {}]
  %s4 = inlined_call_operand.<no memory space> [shape: f32[1,1], index: 4, kind: input, shape index: {}]
  %s5 = inlined_call_operand.hbm [shape: f32[2,128], index: 5, kind: output, shape index: {0}]
  %s6 = inlined_call_operand.hbm [shape: f32[2,128], index: 6, kind: output, shape index: {1}]
  %s7 = inlined_call_operand.hbm [shape: f32[2,2], index: 7, kind: output, shape index: {2}]
  %8 = xla_tuple %s5, %s6, %s7
  %s9 = sld [smem:[#allocation0]]
  $region46: #{_forward_core.3} parent=0
    _
  %s11 = ssub.s32 1, %s9
  %s12 = scalar_select 0, %s11, %s9
  %v13 = vstv %s4
  %14 = vst [vmem:[#allocation2] sm:$0x1] %v13
  $region1: #{_forward_core.3} parent=0
    #allocation3 [shape = 'u8[1024]{0}', space=vmem, size = 0x400, scoped, tag = 'output window, operand 0, single buffered']
    #allocation4 [shape = 's32[1]{0}', space=sflag, size = 0x4, scoped, tag = 'scoped memory for _forward_core.3']
    #allocation5 [shape = 'u8[1024]{0}', space=vmem, size = 0x400, scoped, tag = 'output window, operand 1, single buffered']
    #allocation6 [shape = 's32[1]{0}', space=sflag, size = 0x4, scoped, tag = 'scoped memory for _forward_core.3']
    #allocation7 [shape = 'u8[1024]{0}', space=vmem, size = 0x400, scoped, tag = 'output window, operand 2, single buffered']
    %15 = vsyncpa [#allocation4], 0
    %16 = vsyncpa [#allocation6], 0
    // Predicated region
    $region2: #{_forward_core.3} parent=1 // pred_check
      _
    $region3: #{_forward_core.3} parent=1 // pred_check_branch
      %18 = sbr.rel (0) target = $region5
    $region4: #{_forward_core.3} parent=1 // pred_region
      _
    $region5: #{_forward_core.3} parent=1 // pred_fallthru
      _
    // Predicated region
    $region6: #{_forward_core.3} parent=1 // pred_check
      _
    $region7: #{_forward_core.3} parent=1 // pred_check_branch
      %20 = sbr.rel (0) target = $region9
    $region8: #{_forward_core.3} parent=1 // pred_region
      _
    $region9: #{_forward_core.3} parent=1 // pred_fallthru
      _
    // Predicated region
    $region10: #{_forward_core.3} parent=1 // pred_check
      _
    $region11: #{_forward_core.3} parent=1 // pred_check_branch
      %22 = sbr.rel (0) target = $region13
    $region12: #{_forward_core.3} parent=1 // pred_region
      _
    $region13: #{_forward_core.3} parent=1 // pred_fallthru
      _
    // Predicated region
    $region14: #{_forward_core.3} parent=1 // pred_check
      _
    $region15: #{_forward_core.3} parent=1 // pred_check_branch
      %24 = sbr.rel (0) target = $region17
    $region16: #{_forward_core.3} parent=1 // pred_region
      _
    $region17: #{_forward_core.3} parent=1 // pred_fallthru
      _
    // Predicated region
    $region18: #{_forward_core.3} parent=1 // pred_check
      _
    $region19: #{_forward_core.3} parent=1 // pred_check_branch
      %26 = sbr.rel (0) target = $region21
    $region20: #{_forward_core.3} parent=1 // pred_region
      _
    $region21: #{_forward_core.3} parent=1 // pred_fallthru
      _
    %v28 = vld [vmem:[%s0] sm:$0x3]
    %v29 = vmul.f32 %v28, %v28
    %vm30 = vcmask 1041408
    %v31 = vsel %vm30, %v29, 0.0
    %32 = vadd.xlane.f32.xlu0 %v31
    %v33 = vpop.xlane.xlu0 %32
    %v34 = vadd.f32 %v33, 1e-12
    %v35 = vrsqrt.pop %v34
    %v36 = vmul.f32 %v35, %v34
    %v37 = vmul.f32 %v36, %v35
    %v38 = vmul.f32 0.5, %v37
    %v39 = vsub.f32 1.5, %v38
    %v40 = vmul.f32 %v35, %v39
    %vm41 = vweird.f32 %v34
    %vm42 = vweird.f32 %v35
    %vm43 = vmor %vm41, %vm42
    %v44 = vsel %vm43, %v35, %v40
    %v45 = vmul.f32 %v28, %v44
    %v46 = vld [vmem:[%s1] sm:$0x1]
    %v47 = vld [vmem:[%s2] sm:$0xf]
    %v48 = vld [vmem:[%s2 + $0x4] sm:$0xf]
    %v49 = vld [vmem:[%s2 + $0x8] sm:$0xf]
    %v50 = vld [vmem:[%s2 + $0xc] sm:$0xf]
    %v51 = vld [vmem:[%s2 + $0x10] sm:$0xf]
    %v52 = vld [vmem:[%s2 + $0x14] sm:$0xf]
    %v53 = vld [vmem:[%s2 + $0x18] sm:$0xf]
    %v54 = vld [vmem:[%s2 + $0x1c] sm:$0xf]
    %v55 = vld [vmem:[%s2 + $0x20] sm:$0xf]
    %v56 = vld [vmem:[%s2 + $0x24] sm:$0xf]
    %v57 = vld [vmem:[%s2 + $0x28] sm:$0xf]
    %v58 = vld [vmem:[%s2 + $0x2c] sm:$0xf]
    %v59 = vld [vmem:[%s2 + $0x30] sm:$0xf]
    %v60 = vld [vmem:[%s2 + $0x34] sm:$0xf]
    %v61 = vld [vmem:[%s2 + $0x38] sm:$0xf]
    %v62 = vld [vmem:[%s2 + $0x3c] sm:$0xf]
    %v63 = vld [vmem:[%s3] sm:$0x1]
    %v65 = vperm.slane %v63, 0
    %v83 = vunpack.c.l.b16 %v47
    %v84 = vunpack.c.l.b16 %v48
    %v85 = vunpack.c.l.b16 %v49
    %v86 = vunpack.c.l.b16 %v50
    %v87 = vunpack.c.l.b16 %v51
    %v88 = vunpack.c.l.b16 %v52
    %v89 = vunpack.c.l.b16 %v53
    %v90 = vunpack.c.l.b16 %v54
    %v91 = vunpack.c.l.b16 %v55
    %v92 = vunpack.c.l.b16 %v56
    %v93 = vunpack.c.l.b16 %v57
    %v94 = vunpack.c.l.b16 %v58
    %v95 = vunpack.c.l.b16 %v59
    %v96 = vunpack.c.l.b16 %v60
    %v97 = vunpack.c.l.b16 %v61
    %v98 = vunpack.c.l.b16 %v62
    %v99 = vpack.c.b16 %v84, %v83
    %v100 = vpack.c.b16 %v86, %v85
    %v101 = vpack.c.b16 %v88, %v87
    %v102 = vpack.c.b16 %v90, %v89
    %v103 = vpack.c.b16 %v92, %v91
    %v104 = vpack.c.b16 %v94, %v93
    %v105 = vpack.c.b16 %v96, %v95
    %v106 = vpack.c.b16 %v98, %v97
    %115 = vmatpush.bf16.msra.mxu0 %v106
    %116 = vmatpush.bf16.msra.mxu0 %v105
    %117 = vmatpush.bf16.msra.mxu0 %v104
    %118 = vmatpush.bf16.msra.mxu0 %v103
    %119 = vmatpush.bf16.msra.mxu0 %v102
    %120 = vmatpush.bf16.msra.mxu0 %v101
    %121 = vmatpush.bf16.msra.mxu0 %v100
    %122 = vmatpush.bf16.msra.mxu0 %v99
    %123 = vmatmul.bf16.gmra.mxu0 %v46
    %v124 = vpop.f32.mrf.mxu0
    %v125 = vadd.f32 %v65, %v124
    %v126 = vpop.f32.mrf.mxu0
    %127 = vdwg.mxu0
    %v128 = vmul.f32 %v125, %v125
    %v129 = vsel %vm30, %v128, 0.0
    %130 = vadd.xlane.f32.xlu0 %v129
    %v131 = vpop.xlane.xlu0 %130
    %v132 = vadd.f32 %v131, 1e-12
    %v133 = vrsqrt.pop %v132
    %v134 = vmul.f32 %v133, %v132
    %v135 = vmul.f32 %v134, %v133
    %v136 = vmul.f32 0.5, %v135
    %v137 = vsub.f32 1.5, %v136
    %v138 = vmul.f32 %v133, %v137
    %vm139 = vweird.f32 %v132
    %vm140 = vweird.f32 %v133
    %vm141 = vmor %vm139, %vm140
    %v142 = vsel %vm141, %v133, %v138
    %v143 = vmul.f32 %v125, %v142
    %v144 = vld [vmem:[#allocation2] sm:$0x1]
    %v145 = vmul.f32 %v144, 1.442695
    %v146 = vpow.pop %v145
    %v148 = vperm.slane %v146, 0
    %149 = vset.pattern.permute.xlu0 0
    %150 = vperm.xlu0 %149, %v148
    %v151 = vpop.permute.xlu0 %150
    %v153 = vmul.f32 %v151, %v45
    %154 = vst [vmem:[#allocation3] sm:$0x3] %v153
    %155 = vst [vmem:[#allocation5] sm:$0x3] %v143
    %v156 = vpack.c.bf16 %v45, %v45
    %v157 = vpack.c.bf16 %v143, %v143
    %158 = vmatpush.bf16.xpose.msra.mxu0 0
    %159 = vmatpush.bf16.xpose.msra.mxu0 0
    %160 = vmatpush.bf16.xpose.msra.mxu0 0
    %161 = vmatpush.bf16.xpose.msra.mxu0 0
    %162 = vmatpush.bf16.xpose.msra.mxu0 0
    %163 = vmatpush.bf16.xpose.msra.mxu0 0
    %164 = vmatpush.bf16.xpose.msra.mxu0 0
    %165 = vmatpush.bf16.xpose.msra.mxu0 %v157
    %166 = vmatmul.bf16.gmra.mxu0 %v156
    %v167 = vpop.f32.mrf.mxu0
    %v168 = vadd.f32 0.0, %v167
    %v169 = vpop.f32.mrf.mxu0
    %170 = vdwg.mxu0
    %v171 = vmul.f32 %v151, %v168
    %vm172 = vcmask 9216
    %173 = vst.msk [vmem:[#allocation7] sm:$0x3] %vm172, %v171
    // Predicated region
    $region22: #{_forward_core.3} parent=1 // pred_check
      _
    $region23: #{_forward_core.3} parent=1 // pred_check_branch
      %175 = sbr.rel (0) target = $region25
    $region24: #{_forward_core.3} parent=1 // pred_region
      %177 = vsyncadd [#allocation4], 0
      %s179 = sshll.u32 [#allocation3], 4
      %s180 = int_to_ptr.vmem [resolvable:$true] %s179
      %s181 = sshll.u32 %s5, 4
      %s182 = int_to_ptr.hbm [resolvable:$true] %s181
      %184 = dma.vmem_to_hbm [thread:$0]  %s180, 32, %s182, [#allocation4]
    $region25: #{_forward_core.3} parent=1 // pred_fallthru
      _
    // Predicated region
    $region26: #{_forward_core.3} parent=1 // pred_check
      _
    $region27: #{_forward_core.3} parent=1 // pred_check_branch
      %186 = sbr.rel (0) target = $region29
    $region28: #{_forward_core.3} parent=1 // pred_region
      %188 = vsyncadd [#allocation6], 0
      %s190 = sshll.u32 [#allocation5], 4
      %s191 = int_to_ptr.vmem [resolvable:$true] %s190
      %s192 = sshll.u32 %s6, 4
      %s193 = int_to_ptr.hbm [resolvable:$true] %s192
      %195 = dma.vmem_to_hbm [thread:$0]  %s191, 32, %s193, [#allocation6]
    $region29: #{_forward_core.3} parent=1 // pred_fallthru
      _
    // Predicated region
    $region30: #{_forward_core.3} parent=1 // pred_check
      _
    $region31: #{_forward_core.3} parent=1 // pred_check_branch
      %197 = sbr.rel (0) target = $region33
    $region32: #{_forward_core.3} parent=1 // pred_region
      %199 = vsyncadd [#allocation6], 0
      %s201 = sshll.u32 [#allocation7], 4
      %s202 = int_to_ptr.vmem [resolvable:$true] %s201
      %s203 = sshll.u32 %s7, 4
      %s204 = int_to_ptr.hbm [resolvable:$true] %s203
      %206 = dma.vmem_to_hbm [thread:$0]  %s202, 32, %s204, [#allocation6]
    $region33: #{_forward_core.3} parent=1 // pred_fallthru
      _
    // Predicated region
    $region34: #{_forward_core.3} parent=1 // pred_check
      _
    $region35: #{_forward_core.3} parent=1 // pred_check_branch
      %208 = sbr.rel (0) target = $region37
    $region36: #{_forward_core.3} parent=1 // pred_region
      %210 = dma.done [#allocation4], 32
    $region37: #{_forward_core.3} parent=1 // pred_fallthru
      _
    // Predicated region
    $region38: #{_forward_core.3} parent=1 // pred_check
      _
    $region39: #{_forward_core.3} parent=1 // pred_check_branch
      %212 = sbr.rel (0) target = $region41
    $region40: #{_forward_core.3} parent=1 // pred_region
      %214 = dma.done [#allocation6], 32
    $region41: #{_forward_core.3} parent=1 // pred_fallthru
      _
    // Predicated region
    $region42: #{_forward_core.3} parent=1 // pred_check
      _
    $region43: #{_forward_core.3} parent=1 // pred_check_branch
      %216 = sbr.rel (0) target = $region45
    $region44: #{_forward_core.3} parent=1 // pred_region
      %218 = dma.done [#allocation6], 32
    $region45: #{_forward_core.3} parent=1 // pred_fallthru
      _
    %219 = vsyncpa [#allocation4], 1
    %220 = vsyncpa [#allocation6], 1

</llo_original>
